<compile_context>
chip_gen: v7x
topology: tpu7x:2x2x1
jax: 0.10.0
libtpu: 0.0.40
codegen_flags: <defaults>
</compile_context>

<pallas_src>
import functools

import jax
import jax.numpy as jnp
import numpy as np
from jax.experimental import pallas as pl
from jax.experimental.pallas import tpu as pltpu

BN_EPS = 1e-5                        # nn.BatchNorm1d default eps
SELU_ALPHA = 1.6732632423543772      # F.selu constants
SELU_SCALE = 1.0507009873554805
OUT_LANES = 128                      # lane-dense fused output width


def _selu(x):
    # exp(min(x, 0)) keeps the unselected branch finite.
    return SELU_SCALE * jnp.where(
        x > 0, x, SELU_ALPHA * (jnp.exp(jnp.minimum(x, 0.0)) - 1.0))


def ppo_kernel(x_ref, w1_ref, b1_ref, w2_ref, b2_ref, wh_ref, bh_ref, out_ref, *, a_size):
    x = x_ref[...]

    # hidden layer 1: Linear -> SELU   (BatchNorm1d(eval) folded into layer 2 weights)
    h = jnp.dot(x, w1_ref[...], preferred_element_type=jnp.float32) + b1_ref[...]
    h = _selu(h)

    # hidden layer 2: Linear (BN of layer 1 folded into w2/b2) -> SELU
    h = jnp.dot(h, w2_ref[...], preferred_element_type=jnp.float32) + b2_ref[...]
    h = _selu(h)

    # fused heads: lanes [0, a_size) = action scores, lane a_size = value, rest = 0.
    scores = jnp.dot(h, wh_ref[...], preferred_element_type=jnp.float32) + bh_ref[...]

    lane = jax.lax.broadcasted_iota(jnp.int32, scores.shape, 1)
    act_mask = lane < a_size

    # log_softmax over the action lanes only (numerically stabilized).
    masked = jnp.where(act_mask, scores, -jnp.inf)
    m = jnp.max(masked, axis=-1, keepdims=True)
    exps = jnp.exp(masked - m)                       # exp(-inf) == 0 on pad / value lanes
    lse = jnp.log(jnp.sum(exps, axis=-1, keepdims=True))
    logp = scores - m - lse

    # lane-dense output slab: [log-probs | value | zeros]
    # (non-action lanes already carry the exact head output: value in lane a_size,
    #  0.0 in the zero-weight pad lanes) -> single select, one unmasked 128-lane store.
    out_ref[...] = jnp.where(act_mask, logp, scores)


def _fold_params(p, a_size):
    """Host-side prep: fold eval-BN into (w2, b2) and fuse+pad the two heads."""
    scale = p["g1"] * jax.lax.rsqrt(p["var1"] + BN_EPS)        # (1, H1)
    shift = p["be1"] - p["mu1"] * scale                        # (1, H1)
    w2f = p["w2"] * scale[0][:, None]                          # (H1, H2)
    b2f = p["b2"] + shift @ p["w2"]                            # (1, H2)

    h2 = p["w2"].shape[1]
    assert a_size + 1 <= OUT_LANES
    wh = jnp.zeros((h2, OUT_LANES), jnp.float32)
    wh = wh.at[:, :a_size].set(p["wa"]).at[:, a_size].set(p["wv"][:, 0])
    bh = jnp.zeros((1, OUT_LANES), jnp.float32)
    bh = bh.at[:, :a_size].set(p["ba"]).at[:, a_size].set(p["bv"][:, 0])
    return p["w1"], p["b1"], w2f, b2f, wh, bh


@functools.partial(jax.jit, static_argnames=("a_size", "tb"))
def ppo_forward(x, params, a_size, *, tb=128):
    """Returns (log_action_probs (B, a_size), state_values (B, 1))."""
    B, s_dim = x.shape
    w1, b1, w2f, b2f, wh, bh = _fold_params(params, a_size)
    h1, h2 = w1.shape[1], w2f.shape[1]

    # Pad the batch so every grid step processes a full, aligned tile.
    pad = (-B) % tb
    if pad:
        x = jnp.concatenate([x, jnp.zeros((pad, s_dim), x.dtype)], axis=0)
    bp = B + pad
    grid = (bp // tb,)

    cost = pl.CostEstimate(
        flops=2 * bp * (s_dim * h1 + h1 * h2 + h2 * OUT_LANES),
        transcendentals=bp * (h1 + h2 + OUT_LANES),
        bytes_accessed=4 * (bp * s_dim + bp * OUT_LANES
                            + w1.size + b1.size + w2f.size + b2f.size + wh.size + bh.size),
    )

    out = pl.pallas_call(
        functools.partial(ppo_kernel, a_size=a_size),
        out_shape=jax.ShapeDtypeStruct((bp, OUT_LANES), jnp.float32),
        grid=grid,
        in_specs=[
            pl.BlockSpec((tb, s_dim), lambda i: (i, 0)),   # x: streamed per batch tile
            pl.BlockSpec(w1.shape, lambda i: (0, 0)),      # weights: constant block index
            pl.BlockSpec(b1.shape, lambda i: (0, 0)),      #   -> VMEM-resident, no re-DMA
            pl.BlockSpec(w2f.shape, lambda i: (0, 0)),
            pl.BlockSpec(b2f.shape, lambda i: (0, 0)),
            pl.BlockSpec(wh.shape, lambda i: (0, 0)),
            pl.BlockSpec(bh.shape, lambda i: (0, 0)),
        ],
        out_specs=pl.BlockSpec((tb, OUT_LANES), lambda i: (i, 0)),
        compiler_params=pltpu.CompilerParams(
            dimension_semantics=("parallel",)),            # shards batch tiles across TCs on v7x
        cost_estimate=cost,
    )(x, w1, b1, w2f, b2f, wh, bh)

    out = out[:B]
    return out[:, :a_size], out[:, a_size:a_size + 1]


def _linear_params(key, fan_in, fan_out):
    """PyTorch nn.Linear default init: U(-1/sqrt(fan_in), 1/sqrt(fan_in))."""
    kw, kb = jax.random.split(key)
    bound = 1.0 / np.sqrt(fan_in)
    w = jax.random.uniform(kw, (fan_in, fan_out), jnp.float32, -bound, bound)
    b = jax.random.uniform(kb, (1, fan_out), jnp.float32, -bound, bound)
    return w, b


def make_params(key, s_dim, h1, h2, a_size):
    k1, k2, k3, k4 = jax.random.split(key, 4)
    w1, b1 = _linear_params(k1, s_dim, h1)
    w2, b2 = _linear_params(k2, h1, h2)
    wa, ba = _linear_params(k3, h2, a_size)
    wv, bv = _linear_params(k4, h2, 1)
    # Deterministic, non-trivial BatchNorm1d (eval-mode) parameters for layer 1.
    idx = jnp.arange(h1, dtype=jnp.float32)[None, :]
    g1 = 1.0 + 0.02 * idx
    be1 = 0.01 * idx - 0.1
    mu1 = 0.05 * jnp.sin(idx)
    var1 = 1.0 + 0.1 * jnp.cos(idx) ** 2
    return dict(w1=w1, b1=b1, g1=g1, be1=be1, mu1=mu1, var1=var1,
                w2=w2, b2=b2, wa=wa, ba=ba, wv=wv, bv=bv)


def ppo_forward_ref(x, p):
    """Pure-JAX reference mirroring the PyTorch forward (eval mode, unfolded BN)."""
    h = _selu(x @ p["w1"] + p["b1"])
    h = (h - p["mu1"]) * jax.lax.rsqrt(p["var1"] + BN_EPS) * p["g1"] + p["be1"]
    h = _selu(h @ p["w2"] + p["b2"])
    scores = h @ p["wa"] + p["ba"]
    logp = jax.nn.log_softmax(scores, axis=-1)
    val = h @ p["wv"] + p["bv"]
    return logp, val


if __name__ == "__main__":
    B, S_DIM, H1, H2, A_SIZE = 512, 16, 32, 32, 8

    key = jax.random.PRNGKey(0)
    k_params, k_x = jax.random.split(key)
    params = make_params(k_params, S_DIM, H1, H2, A_SIZE)
    states = jax.random.normal(k_x, (B, S_DIM), jnp.float32)

    log_a_probs, state_values = ppo_forward(states, params, A_SIZE, tb=128)
    jax.block_until_ready((log_a_probs, state_values))

    ref_logp, ref_val = ppo_forward_ref(states, params)
    np.testing.assert_allclose(np.asarray(log_a_probs), np.asarray(ref_logp),
                               rtol=1e-4, atol=1e-4)
    np.testing.assert_allclose(np.asarray(state_values), np.asarray(ref_val),
                               rtol=1e-4, atol=1e-4)

    assert log_a_probs.shape == (B, A_SIZE)
    assert state_values.shape == (B, 1)
    print("KERNEL_OK")
</pallas_src>

<mosaic_0001>
module attributes {stable_mosaic.version = 11 : i64} {
  func.func @ppo_kernel(%arg0: i32, %arg1: memref<128x16xf32, #tpu.memory_space<vmem>>, %arg2: memref<16x32xf32, #tpu.memory_space<vmem>>, %arg3: memref<1x32xf32, #tpu.memory_space<vmem>>, %arg4: memref<32x32xf32, #tpu.memory_space<vmem>>, %arg5: memref<1x32xf32, #tpu.memory_space<vmem>>, %arg6: memref<32x128xf32, #tpu.memory_space<vmem>>, %arg7: memref<1x128xf32, #tpu.memory_space<vmem>>, %arg8: memref<128x128xf32, #tpu.memory_space<vmem>>) attributes {dimension_semantics = [#tpu.dimension_semantics<parallel>], iteration_bounds = array<i64: 4>, scalar_prefetch = 0 : i64, scratch_operands = 0 : i64, tpu.core_type = #tpu.core_type<tc>, window_params = [{transform_indices = @transform_0, window_bounds = array<i64: 128, 16>}, {pipeline_mode = #tpu.pipeline_mode<synchronous>, transform_indices = @transform_1, window_bounds = array<i64: 16, 32>}, {pipeline_mode = #tpu.pipeline_mode<synchronous>, transform_indices = @transform_2, window_bounds = array<i64: 1, 32>}, {pipeline_mode = #tpu.pipeline_mode<synchronous>, transform_indices = @transform_3, window_bounds = array<i64: 32, 32>}, {pipeline_mode = #tpu.pipeline_mode<synchronous>, transform_indices = @transform_4, window_bounds = array<i64: 1, 32>}, {pipeline_mode = #tpu.pipeline_mode<synchronous>, transform_indices = @transform_5, window_bounds = array<i64: 32, 128>}, {pipeline_mode = #tpu.pipeline_mode<synchronous>, transform_indices = @transform_6, window_bounds = array<i64: 1, 128>}, {transform_indices = @transform_7, window_bounds = array<i64: 128, 128>}]} {
    %c0 = arith.constant 0 : index
    %c0_0 = arith.constant 0 : index
    %0 = vector.load %arg1[%c0, %c0_0] : memref<128x16xf32, #tpu.memory_space<vmem>>, vector<128x16xf32>
    %c0_1 = arith.constant 0 : index
    %c0_2 = arith.constant 0 : index
    %1 = vector.load %arg2[%c0_1, %c0_2] : memref<16x32xf32, #tpu.memory_space<vmem>>, vector<16x32xf32>
    %cst = arith.constant dense<0.000000e+00> : vector<128x32xf32>
    %2 = tpu.matmul %0, %1, %cst {dimension_numbers = #tpu.dot_dimension_numbers<[1], [0], [0], [1], [0, 0, 1, 1], [], []>} : vector<128x16xf32>, vector<16x32xf32>, vector<128x32xf32> -> vector<128x32xf32>
    %c0_3 = arith.constant 0 : index
    %c0_4 = arith.constant 0 : index
    %3 = vector.load %arg3[%c0_3, %c0_4] : memref<1x32xf32, #tpu.memory_space<vmem>>, vector<1x32xf32>
    %4 = vector.broadcast %3 : vector<1x32xf32> to vector<128x32xf32>
    %5 = arith.addf %2, %4 : vector<128x32xf32>
    %cst_5 = arith.constant 0.000000e+00 : f32
    %6 = vector.broadcast %cst_5 : f32 to vector<128x32xf32>
    %7 = arith.cmpf ogt, %5, %6 : vector<128x32xf32>
    %cst_6 = arith.constant 0.000000e+00 : f32
    %8 = vector.broadcast %cst_6 : f32 to vector<128x32xf32>
    %9 = arith.minimumf %5, %8 : vector<128x32xf32>
    %10 = math.exp %9 : vector<128x32xf32>
    %cst_7 = arith.constant 1.000000e+00 : f32
    %11 = vector.broadcast %cst_7 : f32 to vector<128x32xf32>
    %12 = arith.subf %10, %11 : vector<128x32xf32>
    %cst_8 = arith.constant 1.67326319 : f32
    %13 = vector.broadcast %cst_8 : f32 to vector<128x32xf32>
    %14 = arith.mulf %13, %12 : vector<128x32xf32>
    %15 = arith.select %7, %5, %14 : vector<128x32xi1>, vector<128x32xf32>
    %cst_9 = arith.constant 1.05070102 : f32
    %16 = vector.broadcast %cst_9 : f32 to vector<128x32xf32>
    %17 = arith.mulf %16, %15 : vector<128x32xf32>
    %c0_10 = arith.constant 0 : index
    %c0_11 = arith.constant 0 : index
    %18 = vector.load %arg4[%c0_10, %c0_11] : memref<32x32xf32, #tpu.memory_space<vmem>>, vector<32x32xf32>
    %cst_12 = arith.constant dense<0.000000e+00> : vector<128x32xf32>
    %19 = tpu.matmul %17, %18, %cst_12 {dimension_numbers = #tpu.dot_dimension_numbers<[1], [0], [0], [1], [0, 0, 1, 1], [], []>} : vector<128x32xf32>, vector<32x32xf32>, vector<128x32xf32> -> vector<128x32xf32>
    %c0_13 = arith.constant 0 : index
    %c0_14 = arith.constant 0 : index
    %20 = vector.load %arg5[%c0_13, %c0_14] : memref<1x32xf32, #tpu.memory_space<vmem>>, vector<1x32xf32>
    %21 = vector.broadcast %20 : vector<1x32xf32> to vector<128x32xf32>
    %22 = arith.addf %19, %21 : vector<128x32xf32>
    %cst_15 = arith.constant 0.000000e+00 : f32
    %23 = vector.broadcast %cst_15 : f32 to vector<128x32xf32>
    %24 = arith.cmpf ogt, %22, %23 : vector<128x32xf32>
    %cst_16 = arith.constant 0.000000e+00 : f32
    %25 = vector.broadcast %cst_16 : f32 to vector<128x32xf32>
    %26 = arith.minimumf %22, %25 : vector<128x32xf32>
    %27 = math.exp %26 : vector<128x32xf32>
    %cst_17 = arith.constant 1.000000e+00 : f32
    %28 = vector.broadcast %cst_17 : f32 to vector<128x32xf32>
    %29 = arith.subf %27, %28 : vector<128x32xf32>
    %cst_18 = arith.constant 1.67326319 : f32
    %30 = vector.broadcast %cst_18 : f32 to vector<128x32xf32>
    %31 = arith.mulf %30, %29 : vector<128x32xf32>
    %32 = arith.select %24, %22, %31 : vector<128x32xi1>, vector<128x32xf32>
    %cst_19 = arith.constant 1.05070102 : f32
    %33 = vector.broadcast %cst_19 : f32 to vector<128x32xf32>
    %34 = arith.mulf %33, %32 : vector<128x32xf32>
    %c0_20 = arith.constant 0 : index
    %c0_21 = arith.constant 0 : index
    %35 = vector.load %arg6[%c0_20, %c0_21] : memref<32x128xf32, #tpu.memory_space<vmem>>, vector<32x128xf32>
    %cst_22 = arith.constant dense<0.000000e+00> : vector<128x128xf32>
    %36 = tpu.matmul %34, %35, %cst_22 {dimension_numbers = #tpu.dot_dimension_numbers<[1], [0], [0], [1], [0, 0, 1, 1], [], []>} : vector<128x32xf32>, vector<32x128xf32>, vector<128x128xf32> -> vector<128x128xf32>
    %c0_23 = arith.constant 0 : index
    %c0_24 = arith.constant 0 : index
    %37 = vector.load %arg7[%c0_23, %c0_24] : memref<1x128xf32, #tpu.memory_space<vmem>>, vector<1x128xf32>
    %38 = vector.broadcast %37 : vector<1x128xf32> to vector<128x128xf32>
    %39 = arith.addf %36, %38 : vector<128x128xf32>
    %40 = tpu.iota {dimensions = array<i32: 1>} : vector<128x128xi32>
    %c8_i32 = arith.constant 8 : i32
    %41 = vector.broadcast %c8_i32 : i32 to vector<128x128xi32>
    %42 = arith.cmpi slt, %40, %41 : vector<128x128xi32>
    %cst_25 = arith.constant 0xFF800000 : f32
    %43 = vector.broadcast %cst_25 : f32 to vector<128x128xf32>
    %44 = arith.select %42, %39, %43 : vector<128x128xi1>, vector<128x128xf32>
    %cst_26 = arith.constant dense<0xFF800000> : vector<128xf32>
    %45 = vector.multi_reduction <maximumf>, %44, %cst_26 [1] : vector<128x128xf32> to vector<128xf32>
    %46 = vector.shape_cast %45 : vector<128xf32> to vector<128x1xf32>
    %47 = vector.broadcast %46 : vector<128x1xf32> to vector<128x128xf32>
    %48 = arith.subf %44, %47 : vector<128x128xf32>
    %49 = math.exp %48 : vector<128x128xf32>
    %cst_27 = arith.constant dense<0.000000e+00> : vector<128xf32>
    %50 = vector.multi_reduction <add>, %49, %cst_27 [1] : vector<128x128xf32> to vector<128xf32>
    %51 = vector.shape_cast %50 : vector<128xf32> to vector<128x1xf32>
    %52 = math.log %51 : vector<128x1xf32>
    %53 = vector.broadcast %46 : vector<128x1xf32> to vector<128x128xf32>
    %54 = arith.subf %39, %53 : vector<128x128xf32>
    %55 = vector.broadcast %52 : vector<128x1xf32> to vector<128x128xf32>
    %56 = arith.subf %54, %55 : vector<128x128xf32>
    %57 = arith.select %42, %56, %39 : vector<128x128xi1>, vector<128x128xf32>
    %c0_28 = arith.constant 0 : index
    %c0_29 = arith.constant 0 : index
    %58 = vector.load %arg8[%c0_28, %c0_29] : memref<128x128xf32, #tpu.memory_space<vmem>>, vector<128x128xf32>
    tpu.vector_store %arg8[%c0_28, %c0_29], %57 {strides = array<i32>} : memref<128x128xf32, #tpu.memory_space<vmem>>, vector<128x128xf32>,
    return
  }
  func.func @transform_0(%arg0: i32) -> (i32, i32) {
    %c0_i32 = arith.constant 0 : i32
    %c0_i32_0 = arith.constant 0 : i32
    return %arg0, %c0_i32 : i32, i32
  }
  func.func @transform_1(%arg0: i32) -> (i32, i32) {
    %c0_i32 = arith.constant 0 : i32
    %c0_i32_0 = arith.constant 0 : i32
    %c0_i32_1 = arith.constant 0 : i32
    return %c0_i32, %c0_i32_0 : i32, i32
  }
  func.func @transform_2(%arg0: i32) -> (i32, i32) {
    %c0_i32 = arith.constant 0 : i32
    %c0_i32_0 = arith.constant 0 : i32
    %c0_i32_1 = arith.constant 0 : i32
    return %c0_i32, %c0_i32_0 : i32, i32
  }
  func.func @transform_3(%arg0: i32) -> (i32, i32) {
    %c0_i32 = arith.constant 0 : i32
    %c0_i32_0 = arith.constant 0 : i32
    %c0_i32_1 = arith.constant 0 : i32
    return %c0_i32, %c0_i32_0 : i32, i32
  }
  func.func @transform_4(%arg0: i32) -> (i32, i32) {
    %c0_i32 = arith.constant 0 : i32
    %c0_i32_0 = arith.constant 0 : i32
    %c0_i32_1 = arith.constant 0 : i32
    return %c0_i32, %c0_i32_0 : i32, i32
  }
  func.func @transform_5(%arg0: i32) -> (i32, i32) {
    %c0_i32 = arith.constant 0 : i32
    %c0_i32_0 = arith.constant 0 : i32
    %c0_i32_1 = arith.constant 0 : i32
    return %c0_i32, %c0_i32_0 : i32, i32
  }
  func.func @transform_6(%arg0: i32) -> (i32, i32) {
    %c0_i32 = arith.constant 0 : i32
    %c0_i32_0 = arith.constant 0 : i32
    %c0_i32_1 = arith.constant 0 : i32
    return %c0_i32, %c0_i32_0 : i32, i32
  }
  func.func @transform_7(%arg0: i32) -> (i32, i32) {
    %c0_i32 = arith.constant 0 : i32
    %c0_i32_0 = arith.constant 0 : i32
    return %arg0, %c0_i32 : i32, i32
  }
}

</mosaic_0001>

<llo_original>
// kernel: ppo_forward.1
$region0: #{ppo_forward.1}
  #allocation0 [shape = 'u32[]', space=smem, size = 0x4, offset = 0x4, fixed_abs, tag = 'smem constant byte address 0x4 - core index']
  #allocation1 [shape = 'u32[144,128]{1,0:T(1,128)}', space=vmem, size = 0x12000, scoped, tag = 'internal scratch']
  %s0 = inlined_call_operand.vmem [shape: f32[512,16], index: 0, kind: input, shape index: {}]
  %s1 = inlined_call_operand.vmem [shape: f32[16,32], index: 1, kind: input, shape index: {}]
  %s2 = inlined_call_operand.vmem [shape: f32[1,32], index: 2, kind: input, shape index: {}]
  %s3 = inlined_call_operand.vmem [shape: f32[32,32], index: 3, kind: input, shape index: {}]
  %s4 = inlined_call_operand.vmem [shape: f32[1,32], index: 4, kind: input, shape index: {}]
  %s5 = inlined_call_operand.vmem [shape: f32[32,128], index: 5, kind: input, shape index: {}]
  %s6 = inlined_call_operand.vmem [shape: f32[1,128], index: 6, kind: input, shape index: {}]
  %s7 = inlined_call_operand.vmem [shape: f32[512,128], index: 7, kind: output, shape index: {}]
  %s8 = sld [smem:[#allocation0]]
  $region61: #{ppo_forward.1} parent=0
    _
  %s10 = ssub.s32 1, %s8
  %s11 = scalar_select 0, %s10, %s8
  loop: start=0, step=1, limit=6
  $region2: #{ppo_forward.1} parent=0 // loop_pre_header
    _
  $region3: #{ppo_forward.1} parent=0 // loop_header
    %s13 = sphi 0, %s17
    %p14 = scmp.ge.s32.totalorder %s13, 6
    %s23 = sphi 0, %s25
    %s26 = sphi 0, %s23
    %s27 = sphi 0, %s26
    %s43 = sphi 0, %s27
    %s47 = sphi 0, %s47
    %s49 = sphi 0, %s47
    %s50 = sphi 0, %s49
    %s64 = sphi 0, %s50
    %s68 = sphi 0, %s68
    %s70 = sphi 0, %s68
    %s71 = sphi 0, %s70
    %s85 = sphi 0, %s71
    %s89 = sphi 0, %s89
    %s91 = sphi 0, %s89
    %s92 = sphi 0, %s91
    %s106 = sphi 0, %s92
    %s110 = sphi 0, %s110
    %s112 = sphi 0, %s110
    %s113 = sphi 0, %s112
    %s127 = sphi 0, %s113
    %s131 = sphi 0, %s131
    %s133 = sphi 0, %s131
    %s134 = sphi 0, %s133
    %s148 = sphi 0, %s134
    %s152 = sphi 0, %s152
    %s154 = sphi 0, %s152
    %s155 = sphi 0, %s154
    %s169 = sphi 0, %s155
    %s175 = sphi 0, %s177
    %s178 = sphi 0, %s175
    %s179 = sphi 0, %s178
    %s195 = sphi 0, %s179
  $region4: #{ppo_forward.1} parent=0 // loop_header_branch
    %16 = sbr.rel (%p14) target = $region8
  $region5: #{ppo_forward.1} parent=0 // loop_body
    %s18 = ssub.s32 %s13, 1
    %s19 = ssub.s32 %s13, 2
    %s20 = sadd.s32 %s13, 1
    %s21 = ssub.s32 %s13, %s20
    %p22 = scmp.eq.s32.totalorder %s21, 0
    %s24 = sadd.s32 %s23, 1
    %s25 = scalar_select %p22, %s23, %s24
    %p28 = pneg %p22
    %p29 = scmp.eq.s32.totalorder %s13, 3
    %p30 = por %p28, %p29
    %p31 = scmp.ne.s32.totalorder %s23, %s26
    %p32 = scmp.eq.s32.totalorder %s13, 0
    %p33 = por %p31, %p32
    %p34 = scmp.ne.s32.totalorder %s23, %s26
    %p35 = scmp.eq.s32.totalorder %s18, 3
    %p36 = por %p34, %p35
    %p37 = scmp.ne.s32.totalorder %s26, %s27
    %p38 = scmp.eq.s32.totalorder %s18, 0
    %p39 = por %p37, %p38
    %p40 = scmp.ne.s32.totalorder %s26, %s27
    %p41 = scmp.eq.s32.totalorder %s19, 3
    %p42 = por %p40, %p41
    %p44 = scmp.ne.s32.totalorder %s27, %s43
    %p45 = scmp.eq.s32.totalorder %s19, 0
    %p46 = por %p44, %p45
    %s48 = sadd.s32 %s47, 1
    %p51 = scmp.eq.s32.totalorder %s13, 3
    %p52 = scmp.ne.s32.totalorder %s47, %s49
    %p53 = scmp.eq.s32.totalorder %s13, 0
    %p54 = por %p52, %p53
    %p55 = scmp.ne.s32.totalorder %s47, %s49
    %p56 = scmp.eq.s32.totalorder %s18, 3
    %p57 = por %p55, %p56
    %p58 = scmp.ne.s32.totalorder %s49, %s50
    %p59 = scmp.eq.s32.totalorder %s18, 0
    %p60 = por %p58, %p59
    %p61 = scmp.ne.s32.totalorder %s49, %s50
    %p62 = scmp.eq.s32.totalorder %s19, 3
    %p63 = por %p61, %p62
    %p65 = scmp.ne.s32.totalorder %s50, %s64
    %p66 = scmp.eq.s32.totalorder %s19, 0
    %p67 = por %p65, %p66
    %s69 = sadd.s32 %s68, 1
    %p72 = scmp.eq.s32.totalorder %s13, 3
    %p73 = scmp.ne.s32.totalorder %s68, %s70
    %p74 = scmp.eq.s32.totalorder %s13, 0
    %p75 = por %p73, %p74
    %p76 = scmp.ne.s32.totalorder %s68, %s70
    %p77 = scmp.eq.s32.totalorder %s18, 3
    %p78 = por %p76, %p77
    %p79 = scmp.ne.s32.totalorder %s70, %s71
    %p80 = scmp.eq.s32.totalorder %s18, 0
    %p81 = por %p79, %p80
    %p82 = scmp.ne.s32.totalorder %s70, %s71
    %p83 = scmp.eq.s32.totalorder %s19, 3
    %p84 = por %p82, %p83
    %p86 = scmp.ne.s32.totalorder %s71, %s85
    %p87 = scmp.eq.s32.totalorder %s19, 0
    %p88 = por %p86, %p87
    %s90 = sadd.s32 %s89, 1
    %p93 = scmp.eq.s32.totalorder %s13, 3
    %p94 = scmp.ne.s32.totalorder %s89, %s91
    %p95 = scmp.eq.s32.totalorder %s13, 0
    %p96 = por %p94, %p95
    %p97 = scmp.ne.s32.totalorder %s89, %s91
    %p98 = scmp.eq.s32.totalorder %s18, 3
    %p99 = por %p97, %p98
    %p100 = scmp.ne.s32.totalorder %s91, %s92
    %p101 = scmp.eq.s32.totalorder %s18, 0
    %p102 = por %p100, %p101
    %p103 = scmp.ne.s32.totalorder %s91, %s92
    %p104 = scmp.eq.s32.totalorder %s19, 3
    %p105 = por %p103, %p104
    %p107 = scmp.ne.s32.totalorder %s92, %s106
    %p108 = scmp.eq.s32.totalorder %s19, 0
    %p109 = por %p107, %p108
    %s111 = sadd.s32 %s110, 1
    %p114 = scmp.eq.s32.totalorder %s13, 3
    %p115 = scmp.ne.s32.totalorder %s110, %s112
    %p116 = scmp.eq.s32.totalorder %s13, 0
    %p117 = por %p115, %p116
    %p118 = scmp.ne.s32.totalorder %s110, %s112
    %p119 = scmp.eq.s32.totalorder %s18, 3
    %p120 = por %p118, %p119
    %p121 = scmp.ne.s32.totalorder %s112, %s113
    %p122 = scmp.eq.s32.totalorder %s18, 0
    %p123 = por %p121, %p122
    %p124 = scmp.ne.s32.totalorder %s112, %s113
    %p125 = scmp.eq.s32.totalorder %s19, 3
    %p126 = por %p124, %p125
    %p128 = scmp.ne.s32.totalorder %s113, %s127
    %p129 = scmp.eq.s32.totalorder %s19, 0
    %p130 = por %p128, %p129
    %s132 = sadd.s32 %s131, 1
    %p135 = scmp.eq.s32.totalorder %s13, 3
    %p136 = scmp.ne.s32.totalorder %s131, %s133
    %p137 = scmp.eq.s32.totalorder %s13, 0
    %p138 = por %p136, %p137
    %p139 = scmp.ne.s32.totalorder %s131, %s133
    %p140 = scmp.eq.s32.totalorder %s18, 3
    %p141 = por %p139, %p140
    %p142 = scmp.ne.s32.totalorder %s133, %s134
    %p143 = scmp.eq.s32.totalorder %s18, 0
    %p144 = por %p142, %p143
    %p145 = scmp.ne.s32.totalorder %s133, %s134
    %p146 = scmp.eq.s32.totalorder %s19, 3
    %p147 = por %p145, %p146
    %p149 = scmp.ne.s32.totalorder %s134, %s148
    %p150 = scmp.eq.s32.totalorder %s19, 0
    %p151 = por %p149, %p150
    %s153 = sadd.s32 %s152, 1
    %p156 = scmp.eq.s32.totalorder %s13, 3
    %p157 = scmp.ne.s32.totalorder %s152, %s154
    %p158 = scmp.eq.s32.totalorder %s13, 0
    %p159 = por %p157, %p158
    %p160 = scmp.ne.s32.totalorder %s152, %s154
    %p161 = scmp.eq.s32.totalorder %s18, 3
    %p162 = por %p160, %p161
    %p163 = scmp.ne.s32.totalorder %s154, %s155
    %p164 = scmp.eq.s32.totalorder %s18, 0
    %p165 = por %p163, %p164
    %p166 = scmp.ne.s32.totalorder %s154, %s155
    %p167 = scmp.eq.s32.totalorder %s19, 3
    %p168 = por %p166, %p167
    %p170 = scmp.ne.s32.totalorder %s155, %s169
    %p171 = scmp.eq.s32.totalorder %s19, 0
    %p172 = por %p170, %p171
    %s173 = ssub.s32 %s13, %s20
    %p174 = scmp.eq.s32.totalorder %s173, 0
    %s176 = sadd.s32 %s175, 1
    %s177 = scalar_select %p174, %s175, %s176
    %p180 = pneg %p174
    %p181 = scmp.eq.s32.totalorder %s13, 3
    %p182 = por %p180, %p181
    %p183 = scmp.ne.s32.totalorder %s175, %s178
    %p184 = scmp.eq.s32.totalorder %s13, 0
    %p185 = por %p183, %p184
    %p186 = scmp.ne.s32.totalorder %s175, %s178
    %p187 = scmp.eq.s32.totalorder %s18, 3
    %p188 = por %p186, %p187
    %p189 = scmp.ne.s32.totalorder %s178, %s179
    %p190 = scmp.eq.s32.totalorder %s18, 0
    %p191 = por %p189, %p190
    %p192 = scmp.ne.s32.totalorder %s178, %s179
    %p193 = scmp.eq.s32.totalorder %s19, 3
    %p194 = por %p192, %p193
    %p196 = scmp.ne.s32.totalorder %s179, %s195
    %p197 = scmp.eq.s32.totalorder %s19, 0
    %p198 = por %p196, %p197
    %p199 = scmp.le.s32.totalorder 1, %s13
    %p200 = scmp.lt.s32.totalorder %s13, 5
    %p201 = pnand %p199, %p200
    %p202 = pneg %p201
    // Predicated region
    $region9: #{ppo_forward.1} parent=5 // pred_check
      _
    $region10: #{ppo_forward.1} parent=5 // pred_check_branch
      %204 = sbr.rel (%p201) target = $region12
    $region11: #{ppo_forward.1} parent=5 // pred_region
      %s205 = ssub.s32 %s13, 1
      // Predicated region
      $region13: #{ppo_forward.1} parent=11 // pred_check
        %p206 = pneg %p60
      $region14: #{ppo_forward.1} parent=11 // pred_check_branch
        %208 = sbr.rel (%p206) target = $region16
      $region15: #{ppo_forward.1} parent=11 // pred_region
        _
      $region16: #{ppo_forward.1} parent=11 // pred_fallthru
        _
      // Predicated region
      $region17: #{ppo_forward.1} parent=11 // pred_check
        %p209 = pneg %p81
      $region18: #{ppo_forward.1} parent=11 // pred_check_branch
        %211 = sbr.rel (%p209) target = $region20
      $region19: #{ppo_forward.1} parent=11 // pred_region
        _
      $region20: #{ppo_forward.1} parent=11 // pred_fallthru
        _
      // Predicated region
      $region21: #{ppo_forward.1} parent=11 // pred_check
        %p212 = pneg %p102
      $region22: #{ppo_forward.1} parent=11 // pred_check_branch
        %214 = sbr.rel (%p212) target = $region24
      $region23: #{ppo_forward.1} parent=11 // pred_region
        _
      $region24: #{ppo_forward.1} parent=11 // pred_fallthru
        _
      // Predicated region
      $region25: #{ppo_forward.1} parent=11 // pred_check
        %p215 = pneg %p123
      $region26: #{ppo_forward.1} parent=11 // pred_check_branch
        %217 = sbr.rel (%p215) target = $region28
      $region27: #{ppo_forward.1} parent=11 // pred_region
        _
      $region28: #{ppo_forward.1} parent=11 // pred_fallthru
        _
      // Predicated region
      $region29: #{ppo_forward.1} parent=11 // pred_check
        %p218 = pneg %p144
      $region30: #{ppo_forward.1} parent=11 // pred_check_branch
        %220 = sbr.rel (%p218) target = $region32
      $region31: #{ppo_forward.1} parent=11 // pred_region
        _
      $region32: #{ppo_forward.1} parent=11 // pred_fallthru
        _
      // Predicated region
      $region33: #{ppo_forward.1} parent=11 // pred_check
        %p221 = pneg %p165
      $region34: #{ppo_forward.1} parent=11 // pred_check_branch
        %223 = sbr.rel (%p221) target = $region36
      $region35: #{ppo_forward.1} parent=11 // pred_region
        _
      $region36: #{ppo_forward.1} parent=11 // pred_fallthru
        _
    $region12: #{ppo_forward.1} parent=5 // pred_fallthru
      _
    %p224 = scmp.lt.s32.totalorder %s13, 4
    // Predicated region
    $region37: #{ppo_forward.1} parent=5 // pred_check
      %p225 = pneg %p224
    $region38: #{ppo_forward.1} parent=5 // pred_check_branch
      %227 = sbr.rel (%p225) target = $region40
    $region39: #{ppo_forward.1} parent=5 // pred_region
      // Predicated region
      $region41: #{ppo_forward.1} parent=39 // pred_check
        %p228 = pneg %p33
      $region42: #{ppo_forward.1} parent=39 // pred_check_branch
        %230 = sbr.rel (%p228) target = $region44
      $region43: #{ppo_forward.1} parent=39 // pred_region
        %s231 = smul.u32 16, %s13
        %p232 = scmp.lt.s32.totalorder %s231, 63
        %s233 = scalar_select %p232, %s231, 63
        %s234 = smul.addr %s233, 8
        %s235 = scalar_lea.vmem %s0, %s234
        %s236 = smul.u32 16, %s13
      $region44: #{ppo_forward.1} parent=39 // pred_fallthru
        _
    $region40: #{ppo_forward.1} parent=5 // pred_fallthru
      _
    %p237 = scmp.le.s32.totalorder 1, %s13
    %p238 = scmp.lt.s32.totalorder %s13, 5
    %p239 = pnand %p237, %p238
    %p240 = pneg %p239
    // Predicated region
    $region45: #{ppo_forward.1} parent=5 // pred_check
      _
    $region46: #{ppo_forward.1} parent=5 // pred_check_branch
      %242 = sbr.rel (%p239) target = $region48
    $region47: #{ppo_forward.1} parent=5 // pred_region
      %s243 = ssub.s32 %s13, 1
      %s244 = smul.u32 16, %s18
      %p245 = scmp.lt.s32.totalorder %s244, 63
      %s246 = scalar_select %p245, %s244, 63
      %s247 = smul.addr %s246, 8
      %s248 = scalar_lea.vmem %s0, %s247
      %p249 = pneg %p39
      %p250 = pneg %p36
      %p251 = pneg %p60
      %p252 = pneg %p57
      %p253 = pneg %p81
      %p254 = pneg %p78
      %p255 = pneg %p102
      %p256 = pneg %p99
      %p257 = pneg %p123
      %p258 = pneg %p120
      %p259 = pneg %p144
      %p260 = pneg %p141
      %p261 = pneg %p165
      %p262 = pneg %p162
      %p263 = pneg %p191
      %p264 = pneg %p188
      %s265 = smul.u32 16, %s18
      %p266 = scmp.lt.s32.totalorder %s265, 63
      %s267 = scalar_select %p266, %s265, 63
      %s268 = smul.addr %s267, 8
      %s269 = scalar_lea.vmem %s7, %s268
      %s270 = smul.u32 16, %s18
      %p271 = scmp.lt.s32.totalorder %s270, 63
      %s272 = scalar_select %p271, %s270, 63
      %s273 = smul.addr %s272, 8
      %s274 = scalar_lea.vmem %s0, %s273
      %s275 = smul.u32 16, %s18
      %s276 = smul.u32 16, %s18
      %p277 = scmp.lt.s32.totalorder %s276, 63
      %s278 = scalar_select %p277, %s276, 63
      %s279 = smul.addr %s278, 8
      %s280 = scalar_lea.vmem %s7, %s279
      %s281 = smul.u32 16, %s18
      %v282 = vld [vmem:[%s274] sm:$0xff]
      %v283 = vld [vmem:[%s274 + $0x8] sm:$0xff]
      %v284 = vld [vmem:[%s274 + $0x10] sm:$0xff]
      %v285 = vld [vmem:[%s274 + $0x18] sm:$0xff]
      %v286 = vld [vmem:[%s274 + $0x20] sm:$0xff]
      %v287 = vld [vmem:[%s274 + $0x28] sm:$0xff]
      %v288 = vld [vmem:[%s274 + $0x30] sm:$0xff]
      %v289 = vld [vmem:[%s274 + $0x38] sm:$0xff]
      %v290 = vld [vmem:[%s274 + $0x40] sm:$0xff]
      %v291 = vld [vmem:[%s274 + $0x48] sm:$0xff]
      %v292 = vld [vmem:[%s274 + $0x50] sm:$0xff]
      %v293 = vld [vmem:[%s274 + $0x58] sm:$0xff]
      %v294 = vld [vmem:[%s274 + $0x60] sm:$0xff]
      %v295 = vld [vmem:[%s274 + $0x68] sm:$0xff]
      %v296 = vld [vmem:[%s274 + $0x70] sm:$0xff]
      %v297 = vld [vmem:[%s274 + $0x78] sm:$0xff]
      %v298 = vld [vmem:[%s1] sm:$0xff]
      %v299 = vld [vmem:[%s1 + $0x8] sm:$0xff]
      %v300 = vld [vmem:[%s2] sm:$0x1]
      %v302 = vlaneseq
      %v303 = vshrl.u32 %v302, 7
      %v304 = vsub.s32 0, %v303
      %v305 = vrot.slane %v300, %v304
      %vm307 = vcmask 130048
      %v309 = vsel %vm307, %v282, 0
      %v312 = vsel %vm307, %v283, 0
      %v315 = vsel %vm307, %v284, 0
      %v318 = vsel %vm307, %v285, 0
      %v321 = vsel %vm307, %v286, 0
      %v324 = vsel %vm307, %v287, 0
      %v327 = vsel %vm307, %v288, 0
      %v330 = vsel %vm307, %v289, 0
      %v333 = vsel %vm307, %v290, 0
      %v336 = vsel %vm307, %v291, 0
      %v339 = vsel %vm307, %v292, 0
      %v342 = vsel %vm307, %v293, 0
      %v345 = vsel %vm307, %v294, 0
      %v348 = vsel %vm307, %v295, 0
      %v351 = vsel %vm307, %v296, 0
      %v354 = vsel %vm307, %v297, 0
      %356 = vmatprep.subr.mxu0 0.0
      %357 = vmatpush1.msra.mxu0 %v298
      %358 = vmatprep.subr.mxu0 0.0
      %359 = vmatpush1.msra.mxu0 %v299
      %360 = vmatprep.subr.mxu0 0.0
      %361 = vmatpush1.msra.mxu0 0.0
      %362 = vmatprep.subr.mxu0 0.0
      %363 = vmatpush1.msra.mxu0 0.0
      %364 = vmatprep.subr.mxu0 0.0
      %365 = vmatpush1.msra.mxu0 0.0
      %366 = vmatprep.subr.mxu0 0.0
      %367 = vmatpush1.msra.mxu0 0.0
      %368 = vmatprep.subr.mxu0 0.0
      %369 = vmatpush1.msra.mxu0 0.0
      %370 = vmatprep.subr.mxu0 0.0
      %371 = vmatpush1.msra.mxu0 0.0
      %372 = vmatprep.subr.mxu0 0.0
      %373 = vmatpush1.msra.mxu0 0.0
      %374 = vmatprep.subr.mxu0 0.0
      %375 = vmatpush1.msra.mxu0 0.0
      %376 = vmatprep.subr.mxu0 0.0
      %377 = vmatpush1.msra.mxu0 0.0
      %378 = vmatprep.subr.mxu0 0.0
      %379 = vmatpush1.msra.mxu0 0.0
      %380 = vmatprep.subr.mxu0 0.0
      %381 = vmatpush1.msra.mxu0 0.0
      %382 = vmatprep.subr.mxu0 0.0
      %383 = vmatpush1.msra.mxu0 0.0
      %384 = vmatprep.subr.mxu0 0.0
      %385 = vmatpush1.msra.mxu0 0.0
      %386 = vmatprep.subr.mxu0 0.0
      %387 = vmatpush1.msra.mxu0 0.0
      %388 = vmatprep.subr.mxu0 0.0
      %389 = vmatpush1.msra.mxu0 0.0
      %390 = vmatprep.subr.mxu0 0.0
      %391 = vmatpush1.msra.mxu0 0.0
      %392 = vmatprep.subr.mxu0 0.0
      %393 = vmatpush1.msra.mxu0 0.0
      %394 = vmatprep.subr.mxu0 0.0
      %395 = vmatpush1.msra.mxu0 0.0
      %396 = vmatprep.subr.mxu0 0.0
      %397 = vmatpush1.msra.mxu0 0.0
      %398 = vmatprep.subr.mxu0 0.0
      %399 = vmatpush1.msra.mxu0 0.0
      %400 = vmatprep.subr.mxu0 0.0
      %401 = vmatpush1.msra.mxu0 0.0
      %402 = vmatprep.subr.mxu0 0.0
      %403 = vmatpush1.msra.mxu0 0.0
      %404 = vmatprep.subr.mxu0 0.0
      %405 = vmatpush1.msra.mxu0 0.0
      %406 = vmatprep.subr.mxu0 0.0
      %407 = vmatpush1.msra.mxu0 0.0
      %408 = vmatprep.subr.mxu0 0.0
      %409 = vmatpush1.msra.mxu0 0.0
      %410 = vmatprep.subr.mxu0 0.0
      %411 = vmatpush1.msra.mxu0 0.0
      %412 = vmatprep.subr.mxu0 0.0
      %413 = vmatpush1.msra.mxu0 0.0
      %414 = vmatprep.subr.mxu0 0.0
      %415 = vmatpush1.msra.mxu0 0.0
      %416 = vmatprep.subr.mxu0 0.0
      %417 = vmatpush1.msra.mxu0 0.0
      %418 = vmatprep.subr.mxu0 0.0
      %419 = vmatpush1.msra.mxu0 0.0
      %420 = vmatprep.mubr.f32.mxu0 0.0
      %421 = vmatmul.mubr.f32.gmra.mrb[0].mxu0 %v309
      %v422 = vpop.f32.mrb[0].mxu0
      %v423 = vadd.f32 %v305, %v422
      %v424 = vpop.f32.mrb[0].mxu0
      %425 = vmatprep.mubr.f32.mxu0 0.0
      %426 = vmatmul.mubr.f32.gmra.mrb[0].mxu0 %v312
      %v427 = vpop.f32.mrb[0].mxu0
      %v428 = vadd.f32 %v305, %v427
      %v429 = vpop.f32.mrb[0].mxu0
      %430 = vmatprep.mubr.f32.mxu0 0.0
      %431 = vmatmul.mubr.f32.gmra.mrb[0].mxu0 %v315
      %v432 = vpop.f32.mrb[0].mxu0
      %v433 = vadd.f32 %v305, %v432
      %v434 = vpop.f32.mrb[0].mxu0
      %435 = vmatprep.mubr.f32.mxu0 0.0
      %436 = vmatmul.mubr.f32.gmra.mrb[0].mxu0 %v318
      %v437 = vpop.f32.mrb[0].mxu0
      %v438 = vadd.f32 %v305, %v437
      %v439 = vpop.f32.mrb[0].mxu0
      %440 = vmatprep.mubr.f32.mxu0 0.0
      %441 = vmatmul.mubr.f32.gmra.mrb[0].mxu0 %v321
      %v442 = vpop.f32.mrb[0].mxu0
      %v443 = vadd.f32 %v305, %v442
      %v444 = vpop.f32.mrb[0].mxu0
      %445 = vmatprep.mubr.f32.mxu0 0.0
      %446 = vmatmul.mubr.f32.gmra.mrb[0].mxu0 %v324
      %v447 = vpop.f32.mrb[0].mxu0
      %v448 = vadd.f32 %v305, %v447
      %v449 = vpop.f32.mrb[0].mxu0
      %450 = vmatprep.mubr.f32.mxu0 0.0
      %451 = vmatmul.mubr.f32.gmra.mrb[0].mxu0 %v327
      %v452 = vpop.f32.mrb[0].mxu0
      %v453 = vadd.f32 %v305, %v452
      %v454 = vpop.f32.mrb[0].mxu0
      %455 = vmatprep.mubr.f32.mxu0 0.0
      %456 = vmatmul.mubr.f32.gmra.mrb[0].mxu0 %v330
      %v457 = vpop.f32.mrb[0].mxu0
      %v458 = vadd.f32 %v305, %v457
      %v459 = vpop.f32.mrb[0].mxu0
      %460 = vmatprep.mubr.f32.mxu0 0.0
      %461 = vmatmul.mubr.f32.gmra.mrb[0].mxu0 %v333
      %v462 = vpop.f32.mrb[0].mxu0
      %v463 = vadd.f32 %v305, %v462
      %v464 = vpop.f32.mrb[0].mxu0
      %465 = vmatprep.mubr.f32.mxu0 0.0
      %466 = vmatmul.mubr.f32.gmra.mrb[0].mxu0 %v336
      %v467 = vpop.f32.mrb[0].mxu0
      %v468 = vadd.f32 %v305, %v467
      %v469 = vpop.f32.mrb[0].mxu0
      %470 = vmatprep.mubr.f32.mxu0 0.0
      %471 = vmatmul.mubr.f32.gmra.mrb[0].mxu0 %v339
      %v472 = vpop.f32.mrb[0].mxu0
      %v473 = vadd.f32 %v305, %v472
      %v474 = vpop.f32.mrb[0].mxu0
      %475 = vmatprep.mubr.f32.mxu0 0.0
      %476 = vmatmul.mubr.f32.gmra.mrb[0].mxu0 %v342
      %v477 = vpop.f32.mrb[0].mxu0
      %v478 = vadd.f32 %v305, %v477
      %v479 = vpop.f32.mrb[0].mxu0
      %480 = vmatprep.mubr.f32.mxu0 0.0
      %481 = vmatmul.mubr.f32.gmra.mrb[0].mxu0 %v345
      %v482 = vpop.f32.mrb[0].mxu0
      %v483 = vadd.f32 %v305, %v482
      %v484 = vpop.f32.mrb[0].mxu0
      %485 = vmatprep.mubr.f32.mxu0 0.0
      %486 = vmatmul.mubr.f32.gmra.mrb[0].mxu0 %v348
      %v487 = vpop.f32.mrb[0].mxu0
      %v488 = vadd.f32 %v305, %v487
      %v489 = vpop.f32.mrb[0].mxu0
      %490 = vmatprep.mubr.f32.mxu0 0.0
      %491 = vmatmul.mubr.f32.gmra.mrb[0].mxu0 %v351
      %v492 = vpop.f32.mrb[0].mxu0
      %v493 = vadd.f32 %v305, %v492
      %v494 = vpop.f32.mrb[0].mxu0
      %495 = vmatprep.mubr.f32.mxu0 0.0
      %496 = vmatmul.mubr.f32.gmra.mrb[0].mxu0 %v354
      %v497 = vpop.f32.mrb[0].mxu0
      %v498 = vadd.f32 %v305, %v497
      %v499 = vpop.f32.mrb[0].mxu0
      %500 = vdwg.mxu0
      %vm501 = vcmp.gt.f32.partialorder %v423, 0.0
      %vm502 = vcmp.gt.f32.partialorder %v428, 0.0
      %vm503 = vcmp.gt.f32.partialorder %v433, 0.0
      %vm504 = vcmp.gt.f32.partialorder %v438, 0.0
      %vm505 = vcmp.gt.f32.partialorder %v443, 0.0
      %vm506 = vcmp.gt.f32.partialorder %v448, 0.0
      %vm507 = vcmp.gt.f32.partialorder %v453, 0.0
      %vm508 = vcmp.gt.f32.partialorder %v458, 0.0
      %vm509 = vcmp.gt.f32.partialorder %v463, 0.0
      %vm510 = vcmp.gt.f32.partialorder %v468, 0.0
      %vm511 = vcmp.gt.f32.partialorder %v473, 0.0
      %vm512 = vcmp.gt.f32.partialorder %v478, 0.0
      %vm513 = vcmp.gt.f32.partialorder %v483, 0.0
      %vm514 = vcmp.gt.f32.partialorder %v488, 0.0
      %vm515 = vcmp.gt.f32.partialorder %v493, 0.0
      %vm516 = vcmp.gt.f32.partialorder %v498, 0.0
      %v517 = vmin.f32 %v423, 0.0
      %v518 = vmin.f32 %v428, 0.0
      %v519 = vmin.f32 %v433, 0.0
      %v520 = vmin.f32 %v438, 0.0
      %v521 = vmin.f32 %v443, 0.0
      %v522 = vmin.f32 %v448, 0.0
      %v523 = vmin.f32 %v453, 0.0
      %v524 = vmin.f32 %v458, 0.0
      %v525 = vmin.f32 %v463, 0.0
      %v526 = vmin.f32 %v468, 0.0
      %v527 = vmin.f32 %v473, 0.0
      %v528 = vmin.f32 %v478, 0.0
      %v529 = vmin.f32 %v483, 0.0
      %v530 = vmin.f32 %v488, 0.0
      %v531 = vmin.f32 %v493, 0.0
      %v532 = vmin.f32 %v498, 0.0
      %v533 = vmul.f32 %v517, 1.442695
      %v534 = vpow.pop %v533
      %v535 = vmul.f32 %v518, 1.442695
      %v536 = vpow.pop %v535
      %v537 = vmul.f32 %v519, 1.442695
      %v538 = vpow.pop %v537
      %v539 = vmul.f32 %v520, 1.442695
      %v540 = vpow.pop %v539
      %v541 = vmul.f32 %v521, 1.442695
      %v542 = vpow.pop %v541
      %v543 = vmul.f32 %v522, 1.442695
      %v544 = vpow.pop %v543
      %v545 = vmul.f32 %v523, 1.442695
      %v546 = vpow.pop %v545
      %v547 = vmul.f32 %v524, 1.442695
      %v548 = vpow.pop %v547
      %v549 = vmul.f32 %v525, 1.442695
      %v550 = vpow.pop %v549
      %v551 = vmul.f32 %v526, 1.442695
      %v552 = vpow.pop %v551
      %v553 = vmul.f32 %v527, 1.442695
      %v554 = vpow.pop %v553
      %v555 = vmul.f32 %v528, 1.442695
      %v556 = vpow.pop %v555
      %v557 = vmul.f32 %v529, 1.442695
      %v558 = vpow.pop %v557
      %v559 = vmul.f32 %v530, 1.442695
      %v560 = vpow.pop %v559
      %v561 = vmul.f32 %v531, 1.442695
      %v562 = vpow.pop %v561
      %v563 = vmul.f32 %v532, 1.442695
      %v564 = vpow.pop %v563
      %v565 = vsub.f32 %v534, 1.0
      %v566 = vsub.f32 %v536, 1.0
      %v567 = vsub.f32 %v538, 1.0
      %v568 = vsub.f32 %v540, 1.0
      %v569 = vsub.f32 %v542, 1.0
      %v570 = vsub.f32 %v544, 1.0
      %v571 = vsub.f32 %v546, 1.0
      %v572 = vsub.f32 %v548, 1.0
      %v573 = vsub.f32 %v550, 1.0
      %v574 = vsub.f32 %v552, 1.0
      %v575 = vsub.f32 %v554, 1.0
      %v576 = vsub.f32 %v556, 1.0
      %v577 = vsub.f32 %v558, 1.0
      %v578 = vsub.f32 %v560, 1.0
      %v579 = vsub.f32 %v562, 1.0
      %v580 = vsub.f32 %v564, 1.0
      %v581 = vmul.f32 %v565, 1.6732632
      %v582 = vmul.f32 %v566, 1.6732632
      %v583 = vmul.f32 %v567, 1.6732632
      %v584 = vmul.f32 %v568, 1.6732632
      %v585 = vmul.f32 %v569, 1.6732632
      %v586 = vmul.f32 %v570, 1.6732632
      %v587 = vmul.f32 %v571, 1.6732632
      %v588 = vmul.f32 %v572, 1.6732632
      %v589 = vmul.f32 %v573, 1.6732632
      %v590 = vmul.f32 %v574, 1.6732632
      %v591 = vmul.f32 %v575, 1.6732632
      %v592 = vmul.f32 %v576, 1.6732632
      %v593 = vmul.f32 %v577, 1.6732632
      %v594 = vmul.f32 %v578, 1.6732632
      %v595 = vmul.f32 %v579, 1.6732632
      %v596 = vmul.f32 %v580, 1.6732632
      %v597 = vsel %vm501, %v423, %v581
      %v598 = vsel %vm502, %v428, %v582
      %v599 = vsel %vm503, %v433, %v583
      %v600 = vsel %vm504, %v438, %v584
      %v601 = vsel %vm505, %v443, %v585
      %v602 = vsel %vm506, %v448, %v586
      %v603 = vsel %vm507, %v453, %v587
      %v604 = vsel %vm508, %v458, %v588
      %v605 = vsel %vm509, %v463, %v589
      %v606 = vsel %vm510, %v468, %v590
      %v607 = vsel %vm511, %v473, %v591
      %v608 = vsel %vm512, %v478, %v592
      %v609 = vsel %vm513, %v483, %v593
      %v610 = vsel %vm514, %v488, %v594
      %v611 = vsel %vm515, %v493, %v595
      %v612 = vsel %vm516, %v498, %v596
      %v613 = vmul.f32 %v597, 1.050701
      %v614 = vmul.f32 %v598, 1.050701
      %v615 = vmul.f32 %v599, 1.050701
      %v616 = vmul.f32 %v600, 1.050701
      %v617 = vmul.f32 %v601, 1.050701
      %v618 = vmul.f32 %v602, 1.050701
      %v619 = vmul.f32 %v603, 1.050701
      %v620 = vmul.f32 %v604, 1.050701
      %v621 = vmul.f32 %v605, 1.050701
      %v622 = vmul.f32 %v606, 1.050701
      %v623 = vmul.f32 %v607, 1.050701
      %v624 = vmul.f32 %v608, 1.050701
      %v625 = vmul.f32 %v609, 1.050701
      %v626 = vmul.f32 %v610, 1.050701
      %v627 = vmul.f32 %v611, 1.050701
      %v628 = vmul.f32 %v612, 1.050701
      %v629 = vld [vmem:[%s3] sm:$0xff]
      %v630 = vld [vmem:[%s3 + $0x8] sm:$0xff]
      %v631 = vld [vmem:[%s3 + $0x10] sm:$0xff]
      %v632 = vld [vmem:[%s3 + $0x18] sm:$0xff]
      %v633 = vld [vmem:[%s4] sm:$0x1]
      %v635 = vlaneseq
      %v636 = vshrl.u32 %v635, 7
      %v637 = vsub.s32 0, %v636
      %v638 = vrot.slane %v633, %v637
      %vm640 = vcmask 261120
      %v642 = vsel %vm640, %v613, 0
      %v645 = vsel %vm640, %v614, 0
      %v648 = vsel %vm640, %v615, 0
      %v651 = vsel %vm640, %v616, 0
      %v654 = vsel %vm640, %v617, 0
      %v657 = vsel %vm640, %v618, 0
      %v660 = vsel %vm640, %v619, 0
      %v663 = vsel %vm640, %v620, 0
      %v666 = vsel %vm640, %v621, 0
      %v669 = vsel %vm640, %v622, 0
      %v672 = vsel %vm640, %v623, 0
      %v675 = vsel %vm640, %v624, 0
      %v678 = vsel %vm640, %v625, 0
      %v681 = vsel %vm640, %v626, 0
      %v684 = vsel %vm640, %v627, 0
      %v687 = vsel %vm640, %v628, 0
      %689 = vmatprep.subr.mxu0 0.0
      %690 = vmatpush1.msra.mxu0 %v629
      %691 = vmatprep.subr.mxu0 0.0
      %692 = vmatpush1.msra.mxu0 %v630
      %693 = vmatprep.subr.mxu0 0.0
      %694 = vmatpush1.msra.mxu0 %v631
      %695 = vmatprep.subr.mxu0 0.0
      %696 = vmatpush1.msra.mxu0 %v632
      %697 = vmatprep.subr.mxu0 0.0
      %698 = vmatpush1.msra.mxu0 0.0
      %699 = vmatprep.subr.mxu0 0.0
      %700 = vmatpush1.msra.mxu0 0.0
      %701 = vmatprep.subr.mxu0 0.0
      %702 = vmatpush1.msra.mxu0 0.0
      %703 = vmatprep.subr.mxu0 0.0
      %704 = vmatpush1.msra.mxu0 0.0
      %705 = vmatprep.subr.mxu0 0.0
      %706 = vmatpush1.msra.mxu0 0.0
      %707 = vmatprep.subr.mxu0 0.0
      %708 = vmatpush1.msra.mxu0 0.0
      %709 = vmatprep.subr.mxu0 0.0
      %710 = vmatpush1.msra.mxu0 0.0
      %711 = vmatprep.subr.mxu0 0.0
      %712 = vmatpush1.msra.mxu0 0.0
      %713 = vmatprep.subr.mxu0 0.0
      %714 = vmatpush1.msra.mxu0 0.0
      %715 = vmatprep.subr.mxu0 0.0
      %716 = vmatpush1.msra.mxu0 0.0
      %717 = vmatprep.subr.mxu0 0.0
      %718 = vmatpush1.msra.mxu0 0.0
      %719 = vmatprep.subr.mxu0 0.0
      %720 = vmatpush1.msra.mxu0 0.0
      %721 = vmatprep.subr.mxu0 0.0
      %722 = vmatpush1.msra.mxu0 0.0
      %723 = vmatprep.subr.mxu0 0.0
      %724 = vmatpush1.msra.mxu0 0.0
      %725 = vmatprep.subr.mxu0 0.0
      %726 = vmatpush1.msra.mxu0 0.0
      %727 = vmatprep.subr.mxu0 0.0
      %728 = vmatpush1.msra.mxu0 0.0
      %729 = vmatprep.subr.mxu0 0.0
      %730 = vmatpush1.msra.mxu0 0.0
      %731 = vmatprep.subr.mxu0 0.0
      %732 = vmatpush1.msra.mxu0 0.0
      %733 = vmatprep.subr.mxu0 0.0
      %734 = vmatpush1.msra.mxu0 0.0
      %735 = vmatprep.subr.mxu0 0.0
      %736 = vmatpush1.msra.mxu0 0.0
      %737 = vmatprep.subr.mxu0 0.0
      %738 = vmatpush1.msra.mxu0 0.0
      %739 = vmatprep.subr.mxu0 0.0
      %740 = vmatpush1.msra.mxu0 0.0
      %741 = vmatprep.subr.mxu0 0.0
      %742 = vmatpush1.msra.mxu0 0.0
      %743 = vmatprep.subr.mxu0 0.0
      %744 = vmatpush1.msra.mxu0 0.0
      %745 = vmatprep.subr.mxu0 0.0
      %746 = vmatpush1.msra.mxu0 0.0
      %747 = vmatprep.subr.mxu0 0.0
      %748 = vmatpush1.msra.mxu0 0.0
      %749 = vmatprep.subr.mxu0 0.0
      %750 = vmatpush1.msra.mxu0 0.0
      %751 = vmatprep.subr.mxu0 0.0
      %752 = vmatpush1.msra.mxu0 0.0
      %753 = vmatprep.mubr.f32.mxu0 0.0
      %754 = vmatmul.mubr.f32.gmra.mrb[0].mxu0 %v642
      %v755 = vpop.f32.mrb[0].mxu0
      %v756 = vadd.f32 %v638, %v755
      %v757 = vpop.f32.mrb[0].mxu0
      %758 = vmatprep.mubr.f32.mxu0 0.0
      %759 = vmatmul.mubr.f32.gmra.mrb[0].mxu0 %v645
      %v760 = vpop.f32.mrb[0].mxu0
      %v761 = vadd.f32 %v638, %v760
      %v762 = vpop.f32.mrb[0].mxu0
      %763 = vmatprep.mubr.f32.mxu0 0.0
      %764 = vmatmul.mubr.f32.gmra.mrb[0].mxu0 %v648
      %v765 = vpop.f32.mrb[0].mxu0
      %v766 = vadd.f32 %v638, %v765
      %v767 = vpop.f32.mrb[0].mxu0
      %768 = vmatprep.mubr.f32.mxu0 0.0
      %769 = vmatmul.mubr.f32.gmra.mrb[0].mxu0 %v651
      %v770 = vpop.f32.mrb[0].mxu0
      %v771 = vadd.f32 %v638, %v770
      %v772 = vpop.f32.mrb[0].mxu0
      %773 = vmatprep.mubr.f32.mxu0 0.0
      %774 = vmatmul.mubr.f32.gmra.mrb[0].mxu0 %v654
      %v775 = vpop.f32.mrb[0].mxu0
      %v776 = vadd.f32 %v638, %v775
      %v777 = vpop.f32.mrb[0].mxu0
      %778 = vmatprep.mubr.f32.mxu0 0.0
      %779 = vmatmul.mubr.f32.gmra.mrb[0].mxu0 %v657
      %v780 = vpop.f32.mrb[0].mxu0
      %v781 = vadd.f32 %v638, %v780
      %v782 = vpop.f32.mrb[0].mxu0
      %783 = vmatprep.mubr.f32.mxu0 0.0
      %784 = vmatmul.mubr.f32.gmra.mrb[0].mxu0 %v660
      %v785 = vpop.f32.mrb[0].mxu0
      %v786 = vadd.f32 %v638, %v785
      %v787 = vpop.f32.mrb[0].mxu0
      %788 = vmatprep.mubr.f32.mxu0 0.0
      %789 = vmatmul.mubr.f32.gmra.mrb[0].mxu0 %v663
      %v790 = vpop.f32.mrb[0].mxu0
      %v791 = vadd.f32 %v638, %v790
      %v792 = vpop.f32.mrb[0].mxu0
      %793 = vmatprep.mubr.f32.mxu0 0.0
      %794 = vmatmul.mubr.f32.gmra.mrb[0].mxu0 %v666
      %v795 = vpop.f32.mrb[0].mxu0
      %v796 = vadd.f32 %v638, %v795
      %v797 = vpop.f32.mrb[0].mxu0
      %798 = vmatprep.mubr.f32.mxu0 0.0
      %799 = vmatmul.mubr.f32.gmra.mrb[0].mxu0 %v669
      %v800 = vpop.f32.mrb[0].mxu0
      %v801 = vadd.f32 %v638, %v800
      %v802 = vpop.f32.mrb[0].mxu0
      %803 = vmatprep.mubr.f32.mxu0 0.0
      %804 = vmatmul.mubr.f32.gmra.mrb[0].mxu0 %v672
      %v805 = vpop.f32.mrb[0].mxu0
      %v806 = vadd.f32 %v638, %v805
      %v807 = vpop.f32.mrb[0].mxu0
      %808 = vmatprep.mubr.f32.mxu0 0.0
      %809 = vmatmul.mubr.f32.gmra.mrb[0].mxu0 %v675
      %v810 = vpop.f32.mrb[0].mxu0
      %v811 = vadd.f32 %v638, %v810
      %v812 = vpop.f32.mrb[0].mxu0
      %813 = vmatprep.mubr.f32.mxu0 0.0
      %814 = vmatmul.mubr.f32.gmra.mrb[0].mxu0 %v678
      %v815 = vpop.f32.mrb[0].mxu0
      %v816 = vadd.f32 %v638, %v815
      %v817 = vpop.f32.mrb[0].mxu0
      %818 = vmatprep.mubr.f32.mxu0 0.0
      %819 = vmatmul.mubr.f32.gmra.mrb[0].mxu0 %v681
      %v820 = vpop.f32.mrb[0].mxu0
      %v821 = vadd.f32 %v638, %v820
      %v822 = vpop.f32.mrb[0].mxu0
      %823 = vmatprep.mubr.f32.mxu0 0.0
      %824 = vmatmul.mubr.f32.gmra.mrb[0].mxu0 %v684
      %v825 = vpop.f32.mrb[0].mxu0
      %v826 = vadd.f32 %v638, %v825
      %v827 = vpop.f32.mrb[0].mxu0
      %828 = vmatprep.mubr.f32.mxu0 0.0
      %829 = vmatmul.mubr.f32.gmra.mrb[0].mxu0 %v687
      %v830 = vpop.f32.mrb[0].mxu0
      %v831 = vadd.f32 %v638, %v830
      %v832 = vpop.f32.mrb[0].mxu0
      %833 = vdwg.mxu0
      %vm834 = vcmp.gt.f32.partialorder %v756, 0.0
      %vm835 = vcmp.gt.f32.partialorder %v761, 0.0
      %vm836 = vcmp.gt.f32.partialorder %v766, 0.0
      %vm837 = vcmp.gt.f32.partialorder %v771, 0.0
      %vm838 = vcmp.gt.f32.partialorder %v776, 0.0
      %vm839 = vcmp.gt.f32.partialorder %v781, 0.0
      %vm840 = vcmp.gt.f32.partialorder %v786, 0.0
      %vm841 = vcmp.gt.f32.partialorder %v791, 0.0
      %vm842 = vcmp.gt.f32.partialorder %v796, 0.0
      %vm843 = vcmp.gt.f32.partialorder %v801, 0.0
      %vm844 = vcmp.gt.f32.partialorder %v806, 0.0
      %vm845 = vcmp.gt.f32.partialorder %v811, 0.0
      %vm846 = vcmp.gt.f32.partialorder %v816, 0.0
      %vm847 = vcmp.gt.f32.partialorder %v821, 0.0
      %vm848 = vcmp.gt.f32.partialorder %v826, 0.0
      %vm849 = vcmp.gt.f32.partialorder %v831, 0.0
      %v850 = vmin.f32 %v756, 0.0
      %v851 = vmin.f32 %v761, 0.0
      %v852 = vmin.f32 %v766, 0.0
      %v853 = vmin.f32 %v771, 0.0
      %v854 = vmin.f32 %v776, 0.0
      %v855 = vmin.f32 %v781, 0.0
      %v856 = vmin.f32 %v786, 0.0
      %v857 = vmin.f32 %v791, 0.0
      %v858 = vmin.f32 %v796, 0.0
      %v859 = vmin.f32 %v801, 0.0
      %v860 = vmin.f32 %v806, 0.0
      %v861 = vmin.f32 %v811, 0.0
      %v862 = vmin.f32 %v816, 0.0
      %v863 = vmin.f32 %v821, 0.0
      %v864 = vmin.f32 %v826, 0.0
      %v865 = vmin.f32 %v831, 0.0
      %v866 = vmul.f32 %v850, 1.442695
      %v867 = vpow.pop %v866
      %v868 = vmul.f32 %v851, 1.442695
      %v869 = vpow.pop %v868
      %v870 = vmul.f32 %v852, 1.442695
      %v871 = vpow.pop %v870
      %v872 = vmul.f32 %v853, 1.442695
      %v873 = vpow.pop %v872
      %v874 = vmul.f32 %v854, 1.442695
      %v875 = vpow.pop %v874
      %v876 = vmul.f32 %v855, 1.442695
      %v877 = vpow.pop %v876
      %v878 = vmul.f32 %v856, 1.442695
      %v879 = vpow.pop %v878
      %v880 = vmul.f32 %v857, 1.442695
      %v881 = vpow.pop %v880
      %v882 = vmul.f32 %v858, 1.442695
      %v883 = vpow.pop %v882
      %v884 = vmul.f32 %v859, 1.442695
      %v885 = vpow.pop %v884
      %v886 = vmul.f32 %v860, 1.442695
      %v887 = vpow.pop %v886
      %v888 = vmul.f32 %v861, 1.442695
      %v889 = vpow.pop %v888
      %v890 = vmul.f32 %v862, 1.442695
      %v891 = vpow.pop %v890
      %v892 = vmul.f32 %v863, 1.442695
      %v893 = vpow.pop %v892
      %v894 = vmul.f32 %v864, 1.442695
      %v895 = vpow.pop %v894
      %v896 = vmul.f32 %v865, 1.442695
      %v897 = vpow.pop %v896
      %v898 = vsub.f32 %v867, 1.0
      %v899 = vsub.f32 %v869, 1.0
      %v900 = vsub.f32 %v871, 1.0
      %v901 = vsub.f32 %v873, 1.0
      %v902 = vsub.f32 %v875, 1.0
      %v903 = vsub.f32 %v877, 1.0
      %v904 = vsub.f32 %v879, 1.0
      %v905 = vsub.f32 %v881, 1.0
      %v906 = vsub.f32 %v883, 1.0
      %v907 = vsub.f32 %v885, 1.0
      %v908 = vsub.f32 %v887, 1.0
      %v909 = vsub.f32 %v889, 1.0
      %v910 = vsub.f32 %v891, 1.0
      %v911 = vsub.f32 %v893, 1.0
      %v912 = vsub.f32 %v895, 1.0
      %v913 = vsub.f32 %v897, 1.0
      %v914 = vmul.f32 %v898, 1.6732632
      %v915 = vmul.f32 %v899, 1.6732632
      %v916 = vmul.f32 %v900, 1.6732632
      %v917 = vmul.f32 %v901, 1.6732632
      %v918 = vmul.f32 %v902, 1.6732632
      %v919 = vmul.f32 %v903, 1.6732632
      %v920 = vmul.f32 %v904, 1.6732632
      %v921 = vmul.f32 %v905, 1.6732632
      %v922 = vmul.f32 %v906, 1.6732632
      %v923 = vmul.f32 %v907, 1.6732632
      %v924 = vmul.f32 %v908, 1.6732632
      %v925 = vmul.f32 %v909, 1.6732632
      %v926 = vmul.f32 %v910, 1.6732632
      %v927 = vmul.f32 %v911, 1.6732632
      %v928 = vmul.f32 %v912, 1.6732632
      %v929 = vmul.f32 %v913, 1.6732632
      %v930 = vsel %vm834, %v756, %v914
      %v931 = vsel %vm835, %v761, %v915
      %v932 = vsel %vm836, %v766, %v916
      %v933 = vsel %vm837, %v771, %v917
      %v934 = vsel %vm838, %v776, %v918
      %v935 = vsel %vm839, %v781, %v919
      %v936 = vsel %vm840, %v786, %v920
      %v937 = vsel %vm841, %v791, %v921
      %v938 = vsel %vm842, %v796, %v922
      %v939 = vsel %vm843, %v801, %v923
      %v940 = vsel %vm844, %v806, %v924
      %v941 = vsel %vm845, %v811, %v925
      %v942 = vsel %vm846, %v816, %v926
      %v943 = vsel %vm847, %v821, %v927
      %v944 = vsel %vm848, %v826, %v928
      %v945 = vsel %vm849, %v831, %v929
      %v946 = vmul.f32 %v930, 1.050701
      %v947 = vmul.f32 %v931, 1.050701
      %v948 = vmul.f32 %v932, 1.050701
      %v949 = vmul.f32 %v933, 1.050701
      %v950 = vmul.f32 %v934, 1.050701
      %v951 = vmul.f32 %v935, 1.050701
      %v952 = vmul.f32 %v936, 1.050701
      %v953 = vmul.f32 %v937, 1.050701
      %v954 = vmul.f32 %v938, 1.050701
      %v955 = vmul.f32 %v939, 1.050701
      %v956 = vmul.f32 %v940, 1.050701
      %v957 = vmul.f32 %v941, 1.050701
      %v958 = vmul.f32 %v942, 1.050701
      %v959 = vmul.f32 %v943, 1.050701
      %v960 = vmul.f32 %v944, 1.050701
      %v961 = vmul.f32 %v945, 1.050701
      %v962 = vld [vmem:[%s5] sm:$0xff]
      %v963 = vld [vmem:[%s5 + $0x8] sm:$0xff]
      %v964 = vld [vmem:[%s5 + $0x10] sm:$0xff]
      %v965 = vld [vmem:[%s5 + $0x18] sm:$0xff]
      %v966 = vld [vmem:[%s6] sm:$0x1]
      %v968 = vlaneseq
      %v969 = vshrl.u32 %v968, 7
      %v970 = vsub.s32 0, %v969
      %v971 = vrot.slane %v966, %v970
      %v974 = vsel %vm640, %v946, 0
      %v977 = vsel %vm640, %v947, 0
      %v980 = vsel %vm640, %v948, 0
      %v983 = vsel %vm640, %v949, 0
      %v986 = vsel %vm640, %v950, 0
      %v989 = vsel %vm640, %v951, 0
      %v992 = vsel %vm640, %v952, 0
      %v995 = vsel %vm640, %v953, 0
      %v998 = vsel %vm640, %v954, 0
      %v1001 = vsel %vm640, %v955, 0
      %v1004 = vsel %vm640, %v956, 0
      %v1007 = vsel %vm640, %v957, 0
      %v1010 = vsel %vm640, %v958, 0
      %v1013 = vsel %vm640, %v959, 0
      %v1016 = vsel %vm640, %v960, 0
      %v1019 = vsel %vm640, %v961, 0
      %1021 = vmatprep.subr.mxu0 0.0
      %1022 = vmatpush1.msra.mxu0 %v962
      %1023 = vmatprep.subr.mxu0 0.0
      %1024 = vmatpush1.msra.mxu0 %v963
      %1025 = vmatprep.subr.mxu0 0.0
      %1026 = vmatpush1.msra.mxu0 %v964
      %1027 = vmatprep.subr.mxu0 0.0
      %1028 = vmatpush1.msra.mxu0 %v965
      %1029 = vmatprep.subr.mxu0 0.0
      %1030 = vmatpush1.msra.mxu0 0.0
      %1031 = vmatprep.subr.mxu0 0.0
      %1032 = vmatpush1.msra.mxu0 0.0
      %1033 = vmatprep.subr.mxu0 0.0
      %1034 = vmatpush1.msra.mxu0 0.0
      %1035 = vmatprep.subr.mxu0 0.0
      %1036 = vmatpush1.msra.mxu0 0.0
      %1037 = vmatprep.subr.mxu0 0.0
      %1038 = vmatpush1.msra.mxu0 0.0
      %1039 = vmatprep.subr.mxu0 0.0
      %1040 = vmatpush1.msra.mxu0 0.0
      %1041 = vmatprep.subr.mxu0 0.0
      %1042 = vmatpush1.msra.mxu0 0.0
      %1043 = vmatprep.subr.mxu0 0.0
      %1044 = vmatpush1.msra.mxu0 0.0
      %1045 = vmatprep.subr.mxu0 0.0
      %1046 = vmatpush1.msra.mxu0 0.0
      %1047 = vmatprep.subr.mxu0 0.0
      %1048 = vmatpush1.msra.mxu0 0.0
      %1049 = vmatprep.subr.mxu0 0.0
      %1050 = vmatpush1.msra.mxu0 0.0
      %1051 = vmatprep.subr.mxu0 0.0
      %1052 = vmatpush1.msra.mxu0 0.0
      %1053 = vmatprep.subr.mxu0 0.0
      %1054 = vmatpush1.msra.mxu0 0.0
      %1055 = vmatprep.subr.mxu0 0.0
      %1056 = vmatpush1.msra.mxu0 0.0
      %1057 = vmatprep.subr.mxu0 0.0
      %1058 = vmatpush1.msra.mxu0 0.0
      %1059 = vmatprep.subr.mxu0 0.0
      %1060 = vmatpush1.msra.mxu0 0.0
      %1061 = vmatprep.subr.mxu0 0.0
      %1062 = vmatpush1.msra.mxu0 0.0
      %1063 = vmatprep.subr.mxu0 0.0
      %1064 = vmatpush1.msra.mxu0 0.0
      %1065 = vmatprep.subr.mxu0 0.0
      %1066 = vmatpush1.msra.mxu0 0.0
      %1067 = vmatprep.subr.mxu0 0.0
      %1068 = vmatpush1.msra.mxu0 0.0
      %1069 = vmatprep.subr.mxu0 0.0
      %1070 = vmatpush1.msra.mxu0 0.0
      %1071 = vmatprep.subr.mxu0 0.0
      %1072 = vmatpush1.msra.mxu0 0.0
      %1073 = vmatprep.subr.mxu0 0.0
      %1074 = vmatpush1.msra.mxu0 0.0
      %1075 = vmatprep.subr.mxu0 0.0
      %1076 = vmatpush1.msra.mxu0 0.0
      %1077 = vmatprep.subr.mxu0 0.0
      %1078 = vmatpush1.msra.mxu0 0.0
      %1079 = vmatprep.subr.mxu0 0.0
      %1080 = vmatpush1.msra.mxu0 0.0
      %1081 = vmatprep.subr.mxu0 0.0
      %1082 = vmatpush1.msra.mxu0 0.0
      %1083 = vmatprep.subr.mxu0 0.0
      %1084 = vmatpush1.msra.mxu0 0.0
      %1085 = vmatprep.mubr.f32.mxu0 0.0
      %1086 = vmatmul.mubr.f32.gmra.mrb[0].mxu0 %v974
      %v1087 = vpop.f32.mrb[0].mxu0
      %v1088 = vadd.f32 %v971, %v1087
      %v1089 = vpop.f32.mrb[0].mxu0
      %1090 = vmatprep.mubr.f32.mxu0 0.0
      %1091 = vmatmul.mubr.f32.gmra.mrb[0].mxu0 %v977
      %v1092 = vpop.f32.mrb[0].mxu0
      %v1093 = vadd.f32 %v971, %v1092
      %v1094 = vpop.f32.mrb[0].mxu0
      %1095 = vmatprep.mubr.f32.mxu0 0.0
      %1096 = vmatmul.mubr.f32.gmra.mrb[0].mxu0 %v980
      %v1097 = vpop.f32.mrb[0].mxu0
      %v1098 = vadd.f32 %v971, %v1097
      %v1099 = vpop.f32.mrb[0].mxu0
      %1100 = vmatprep.mubr.f32.mxu0 0.0
      %1101 = vmatmul.mubr.f32.gmra.mrb[0].mxu0 %v983
      %v1102 = vpop.f32.mrb[0].mxu0
      %v1103 = vadd.f32 %v971, %v1102
      %v1104 = vpop.f32.mrb[0].mxu0
      %1105 = vmatprep.mubr.f32.mxu0 0.0
      %1106 = vmatmul.mubr.f32.gmra.mrb[0].mxu0 %v986
      %v1107 = vpop.f32.mrb[0].mxu0
      %v1108 = vadd.f32 %v971, %v1107
      %v1109 = vpop.f32.mrb[0].mxu0
      %1110 = vmatprep.mubr.f32.mxu0 0.0
      %1111 = vmatmul.mubr.f32.gmra.mrb[0].mxu0 %v989
      %v1112 = vpop.f32.mrb[0].mxu0
      %v1113 = vadd.f32 %v971, %v1112
      %v1114 = vpop.f32.mrb[0].mxu0
      %1115 = vmatprep.mubr.f32.mxu0 0.0
      %1116 = vmatmul.mubr.f32.gmra.mrb[0].mxu0 %v992
      %v1117 = vpop.f32.mrb[0].mxu0
      %v1118 = vadd.f32 %v971, %v1117
      %v1119 = vpop.f32.mrb[0].mxu0
      %1120 = vmatprep.mubr.f32.mxu0 0.0
      %1121 = vmatmul.mubr.f32.gmra.mrb[0].mxu0 %v995
      %v1122 = vpop.f32.mrb[0].mxu0
      %v1123 = vadd.f32 %v971, %v1122
      %v1124 = vpop.f32.mrb[0].mxu0
      %1125 = vmatprep.mubr.f32.mxu0 0.0
      %1126 = vmatmul.mubr.f32.gmra.mrb[0].mxu0 %v998
      %v1127 = vpop.f32.mrb[0].mxu0
      %v1128 = vadd.f32 %v971, %v1127
      %v1129 = vpop.f32.mrb[0].mxu0
      %1130 = vmatprep.mubr.f32.mxu0 0.0
      %1131 = vmatmul.mubr.f32.gmra.mrb[0].mxu0 %v1001
      %v1132 = vpop.f32.mrb[0].mxu0
      %v1133 = vadd.f32 %v971, %v1132
      %v1134 = vpop.f32.mrb[0].mxu0
      %1135 = vmatprep.mubr.f32.mxu0 0.0
      %1136 = vmatmul.mubr.f32.gmra.mrb[0].mxu0 %v1004
      %v1137 = vpop.f32.mrb[0].mxu0
      %v1138 = vadd.f32 %v971, %v1137
      %v1139 = vpop.f32.mrb[0].mxu0
      %1140 = vmatprep.mubr.f32.mxu0 0.0
      %1141 = vmatmul.mubr.f32.gmra.mrb[0].mxu0 %v1007
      %v1142 = vpop.f32.mrb[0].mxu0
      %v1143 = vadd.f32 %v971, %v1142
      %v1144 = vpop.f32.mrb[0].mxu0
      %1145 = vmatprep.mubr.f32.mxu0 0.0
      %1146 = vmatmul.mubr.f32.gmra.mrb[0].mxu0 %v1010
      %v1147 = vpop.f32.mrb[0].mxu0
      %v1148 = vadd.f32 %v971, %v1147
      %v1149 = vpop.f32.mrb[0].mxu0
      %1150 = vmatprep.mubr.f32.mxu0 0.0
      %1151 = vmatmul.mubr.f32.gmra.mrb[0].mxu0 %v1013
      %v1152 = vpop.f32.mrb[0].mxu0
      %v1153 = vadd.f32 %v971, %v1152
      %v1154 = vpop.f32.mrb[0].mxu0
      %1155 = vmatprep.mubr.f32.mxu0 0.0
      %1156 = vmatmul.mubr.f32.gmra.mrb[0].mxu0 %v1016
      %v1157 = vpop.f32.mrb[0].mxu0
      %v1158 = vadd.f32 %v971, %v1157
      %v1159 = vpop.f32.mrb[0].mxu0
      %1160 = vmatprep.mubr.f32.mxu0 0.0
      %1161 = vmatmul.mubr.f32.gmra.mrb[0].mxu0 %v1019
      %v1162 = vpop.f32.mrb[0].mxu0
      %v1163 = vadd.f32 %v971, %v1162
      %v1164 = vpop.f32.mrb[0].mxu0
      %1165 = vdwg.mxu0
      %v1166 = vlaneseq
      %v1167 = vand.u32 %v1166, 127
      %vm1168 = vcmp.lt.s32.totalorder %v1167, 8
      %v1169 = vsel %vm1168, %v1088, -inf
      %v1170 = vsel %vm1168, %v1093, -inf
      %v1171 = vsel %vm1168, %v1098, -inf
      %v1172 = vsel %vm1168, %v1103, -inf
      %v1173 = vsel %vm1168, %v1108, -inf
      %v1174 = vsel %vm1168, %v1113, -inf
      %v1175 = vsel %vm1168, %v1118, -inf
      %v1176 = vsel %vm1168, %v1123, -inf
      %v1177 = vsel %vm1168, %v1128, -inf
      %v1178 = vsel %vm1168, %v1133, -inf
      %v1179 = vsel %vm1168, %v1138, -inf
      %v1180 = vsel %vm1168, %v1143, -inf
      %v1181 = vsel %vm1168, %v1148, -inf
      %v1182 = vsel %vm1168, %v1153, -inf
      %v1183 = vsel %vm1168, %v1158, -inf
      %v1184 = vsel %vm1168, %v1163, -inf
      %1185 = vmax.xlane.f32.xlu0 %v1169
      %v1186 = vpop.xlane.xlu0 %1185
      %1187 = vmax.xlane.f32.xlu0 %v1170
      %v1188 = vpop.xlane.xlu0 %1187
      %1189 = vmax.xlane.f32.xlu0 %v1171
      %v1190 = vpop.xlane.xlu0 %1189
      %1191 = vmax.xlane.f32.xlu0 %v1172
      %v1192 = vpop.xlane.xlu0 %1191
      %1193 = vmax.xlane.f32.xlu0 %v1173
      %v1194 = vpop.xlane.xlu0 %1193
      %1195 = vmax.xlane.f32.xlu0 %v1174
      %v1196 = vpop.xlane.xlu0 %1195
      %1197 = vmax.xlane.f32.xlu0 %v1175
      %v1198 = vpop.xlane.xlu0 %1197
      %1199 = vmax.xlane.f32.xlu0 %v1176
      %v1200 = vpop.xlane.xlu0 %1199
      %1201 = vmax.xlane.f32.xlu0 %v1177
      %v1202 = vpop.xlane.xlu0 %1201
      %1203 = vmax.xlane.f32.xlu0 %v1178
      %v1204 = vpop.xlane.xlu0 %1203
      %1205 = vmax.xlane.f32.xlu0 %v1179
      %v1206 = vpop.xlane.xlu0 %1205
      %1207 = vmax.xlane.f32.xlu0 %v1180
      %v1208 = vpop.xlane.xlu0 %1207
      %1209 = vmax.xlane.f32.xlu0 %v1181
      %v1210 = vpop.xlane.xlu0 %1209
      %1211 = vmax.xlane.f32.xlu0 %v1182
      %v1212 = vpop.xlane.xlu0 %1211
      %1213 = vmax.xlane.f32.xlu0 %v1183
      %v1214 = vpop.xlane.xlu0 %1213
      %1215 = vmax.xlane.f32.xlu0 %v1184
      %v1216 = vpop.xlane.xlu0 %1215
      %v1217 = vsub.f32 %v1169, %v1186
      %v1218 = vsub.f32 %v1170, %v1188
      %v1219 = vsub.f32 %v1171, %v1190
      %v1220 = vsub.f32 %v1172, %v1192
      %v1221 = vsub.f32 %v1173, %v1194
      %v1222 = vsub.f32 %v1174, %v1196
      %v1223 = vsub.f32 %v1175, %v1198
      %v1224 = vsub.f32 %v1176, %v1200
      %v1225 = vsub.f32 %v1177, %v1202
      %v1226 = vsub.f32 %v1178, %v1204
      %v1227 = vsub.f32 %v1179, %v1206
      %v1228 = vsub.f32 %v1180, %v1208
      %v1229 = vsub.f32 %v1181, %v1210
      %v1230 = vsub.f32 %v1182, %v1212
      %v1231 = vsub.f32 %v1183, %v1214
      %v1232 = vsub.f32 %v1184, %v1216
      %v1233 = vmul.f32 %v1217, 1.442695
      %v1234 = vpow.pop %v1233
      %v1235 = vmul.f32 %v1218, 1.442695
      %v1236 = vpow.pop %v1235
      %v1237 = vmul.f32 %v1219, 1.442695
      %v1238 = vpow.pop %v1237
      %v1239 = vmul.f32 %v1220, 1.442695
      %v1240 = vpow.pop %v1239
      %v1241 = vmul.f32 %v1221, 1.442695
      %v1242 = vpow.pop %v1241
      %v1243 = vmul.f32 %v1222, 1.442695
      %v1244 = vpow.pop %v1243
      %v1245 = vmul.f32 %v1223, 1.442695
      %v1246 = vpow.pop %v1245
      %v1247 = vmul.f32 %v1224, 1.442695
      %v1248 = vpow.pop %v1247
      %v1249 = vmul.f32 %v1225, 1.442695
      %v1250 = vpow.pop %v1249
      %v1251 = vmul.f32 %v1226, 1.442695
      %v1252 = vpow.pop %v1251
      %v1253 = vmul.f32 %v1227, 1.442695
      %v1254 = vpow.pop %v1253
      %v1255 = vmul.f32 %v1228, 1.442695
      %v1256 = vpow.pop %v1255
      %v1257 = vmul.f32 %v1229, 1.442695
      %v1258 = vpow.pop %v1257
      %v1259 = vmul.f32 %v1230, 1.442695
      %v1260 = vpow.pop %v1259
      %v1261 = vmul.f32 %v1231, 1.442695
      %v1262 = vpow.pop %v1261
      %v1263 = vmul.f32 %v1232, 1.442695
      %v1264 = vpow.pop %v1263
      %1265 = vadd.xlane.f32.xlu0 %v1234
      %v1266 = vpop.xlane.xlu0 %1265
      %1267 = vadd.xlane.f32.xlu0 %v1236
      %v1268 = vpop.xlane.xlu0 %1267
      %1269 = vadd.xlane.f32.xlu0 %v1238
      %v1270 = vpop.xlane.xlu0 %1269
      %1271 = vadd.xlane.f32.xlu0 %v1240
      %v1272 = vpop.xlane.xlu0 %1271
      %1273 = vadd.xlane.f32.xlu0 %v1242
      %v1274 = vpop.xlane.xlu0 %1273
      %1275 = vadd.xlane.f32.xlu0 %v1244
      %v1276 = vpop.xlane.xlu0 %1275
      %1277 = vadd.xlane.f32.xlu0 %v1246
      %v1278 = vpop.xlane.xlu0 %1277
      %1279 = vadd.xlane.f32.xlu0 %v1248
      %v1280 = vpop.xlane.xlu0 %1279
      %1281 = vadd.xlane.f32.xlu0 %v1250
      %v1282 = vpop.xlane.xlu0 %1281
      %1283 = vadd.xlane.f32.xlu0 %v1252
      %v1284 = vpop.xlane.xlu0 %1283
      %1285 = vadd.xlane.f32.xlu0 %v1254
      %v1286 = vpop.xlane.xlu0 %1285
      %1287 = vadd.xlane.f32.xlu0 %v1256
      %v1288 = vpop.xlane.xlu0 %1287
      %1289 = vadd.xlane.f32.xlu0 %v1258
      %v1290 = vpop.xlane.xlu0 %1289
      %1291 = vadd.xlane.f32.xlu0 %v1260
      %v1292 = vpop.xlane.xlu0 %1291
      %1293 = vadd.xlane.f32.xlu0 %v1262
      %v1294 = vpop.xlane.xlu0 %1293
      %1295 = vadd.xlane.f32.xlu0 %v1264
      %v1296 = vpop.xlane.xlu0 %1295
      %v1297 = vlog2.pop %v1266
      %v1298 = vmul.f32 %v1297, 0.6931472
      %v1299 = vlog2.pop %v1268
      %v1300 = vmul.f32 %v1299, 0.6931472
      %v1301 = vlog2.pop %v1270
      %v1302 = vmul.f32 %v1301, 0.6931472
      %v1303 = vlog2.pop %v1272
      %v1304 = vmul.f32 %v1303, 0.6931472
      %v1305 = vlog2.pop %v1274
      %v1306 = vmul.f32 %v1305, 0.6931472
      %v1307 = vlog2.pop %v1276
      %v1308 = vmul.f32 %v1307, 0.6931472
      %v1309 = vlog2.pop %v1278
      %v1310 = vmul.f32 %v1309, 0.6931472
      %v1311 = vlog2.pop %v1280
      %v1312 = vmul.f32 %v1311, 0.6931472
      %v1313 = vlog2.pop %v1282
      %v1314 = vmul.f32 %v1313, 0.6931472
      %v1315 = vlog2.pop %v1284
      %v1316 = vmul.f32 %v1315, 0.6931472
      %v1317 = vlog2.pop %v1286
      %v1318 = vmul.f32 %v1317, 0.6931472
      %v1319 = vlog2.pop %v1288
      %v1320 = vmul.f32 %v1319, 0.6931472
      %v1321 = vlog2.pop %v1290
      %v1322 = vmul.f32 %v1321, 0.6931472
      %v1323 = vlog2.pop %v1292
      %v1324 = vmul.f32 %v1323, 0.6931472
      %v1325 = vlog2.pop %v1294
      %v1326 = vmul.f32 %v1325, 0.6931472
      %v1327 = vlog2.pop %v1296
      %v1328 = vmul.f32 %v1327, 0.6931472
      %v1329 = vsub.f32 %v1088, %v1186
      %v1330 = vsub.f32 %v1093, %v1188
      %v1331 = vsub.f32 %v1098, %v1190
      %v1332 = vsub.f32 %v1103, %v1192
      %v1333 = vsub.f32 %v1108, %v1194
      %v1334 = vsub.f32 %v1113, %v1196
      %v1335 = vsub.f32 %v1118, %v1198
      %v1336 = vsub.f32 %v1123, %v1200
      %v1337 = vsub.f32 %v1128, %v1202
      %v1338 = vsub.f32 %v1133, %v1204
      %v1339 = vsub.f32 %v1138, %v1206
      %v1340 = vsub.f32 %v1143, %v1208
      %v1341 = vsub.f32 %v1148, %v1210
      %v1342 = vsub.f32 %v1153, %v1212
      %v1343 = vsub.f32 %v1158, %v1214
      %v1344 = vsub.f32 %v1163, %v1216
      %v1345 = vsub.f32 %v1329, %v1298
      %v1346 = vsub.f32 %v1330, %v1300
      %v1347 = vsub.f32 %v1331, %v1302
      %v1348 = vsub.f32 %v1332, %v1304
      %v1349 = vsub.f32 %v1333, %v1306
      %v1350 = vsub.f32 %v1334, %v1308
      %v1351 = vsub.f32 %v1335, %v1310
      %v1352 = vsub.f32 %v1336, %v1312
      %v1353 = vsub.f32 %v1337, %v1314
      %v1354 = vsub.f32 %v1338, %v1316
      %v1355 = vsub.f32 %v1339, %v1318
      %v1356 = vsub.f32 %v1340, %v1320
      %v1357 = vsub.f32 %v1341, %v1322
      %v1358 = vsub.f32 %v1342, %v1324
      %v1359 = vsub.f32 %v1343, %v1326
      %v1360 = vsub.f32 %v1344, %v1328
      %v1361 = vsel %vm1168, %v1345, %v1088
      %v1362 = vsel %vm1168, %v1346, %v1093
      %v1363 = vsel %vm1168, %v1347, %v1098
      %v1364 = vsel %vm1168, %v1348, %v1103
      %v1365 = vsel %vm1168, %v1349, %v1108
      %v1366 = vsel %vm1168, %v1350, %v1113
      %v1367 = vsel %vm1168, %v1351, %v1118
      %v1368 = vsel %vm1168, %v1352, %v1123
      %v1369 = vsel %vm1168, %v1353, %v1128
      %v1370 = vsel %vm1168, %v1354, %v1133
      %v1371 = vsel %vm1168, %v1355, %v1138
      %v1372 = vsel %vm1168, %v1356, %v1143
      %v1373 = vsel %vm1168, %v1357, %v1148
      %v1374 = vsel %vm1168, %v1358, %v1153
      %v1375 = vsel %vm1168, %v1359, %v1158
      %v1376 = vsel %vm1168, %v1360, %v1163
      %1377 = vst [vmem:[%s280] sm:$0xff] %v1361
      %1378 = vst [vmem:[%s280 + $0x8] sm:$0xff] %v1362
      %1379 = vst [vmem:[%s280 + $0x10] sm:$0xff] %v1363
      %1380 = vst [vmem:[%s280 + $0x18] sm:$0xff] %v1364
      %1381 = vst [vmem:[%s280 + $0x20] sm:$0xff] %v1365
      %1382 = vst [vmem:[%s280 + $0x28] sm:$0xff] %v1366
      %1383 = vst [vmem:[%s280 + $0x30] sm:$0xff] %v1367
      %1384 = vst [vmem:[%s280 + $0x38] sm:$0xff] %v1368
      %1385 = vst [vmem:[%s280 + $0x40] sm:$0xff] %v1369
      %1386 = vst [vmem:[%s280 + $0x48] sm:$0xff] %v1370
      %1387 = vst [vmem:[%s280 + $0x50] sm:$0xff] %v1371
      %1388 = vst [vmem:[%s280 + $0x58] sm:$0xff] %v1372
      %1389 = vst [vmem:[%s280 + $0x60] sm:$0xff] %v1373
      %1390 = vst [vmem:[%s280 + $0x68] sm:$0xff] %v1374
      %1391 = vst [vmem:[%s280 + $0x70] sm:$0xff] %v1375
      %1392 = vst [vmem:[%s280 + $0x78] sm:$0xff] %v1376
      %s1393 = smul.u32 16, %s18
      %p1394 = scmp.lt.s32.totalorder %s1393, 63
      %s1395 = scalar_select %p1394, %s1393, 63
      %s1396 = smul.addr %s1395, 8
      %s1397 = scalar_lea.vmem %s7, %s1396
      // Predicated region
      $region49: #{ppo_forward.1} parent=47 // pred_check
        %p1398 = pneg %p188
      $region50: #{ppo_forward.1} parent=47 // pred_check_branch
        %1400 = sbr.rel (%p1398) target = $region52
      $region51: #{ppo_forward.1} parent=47 // pred_region
        %s1401 = smul.u32 16, %s18
      $region52: #{ppo_forward.1} parent=47 // pred_fallthru
        _
    $region48: #{ppo_forward.1} parent=5 // pred_fallthru
      _
    %p1402 = scmp.le.s32.totalorder 2, %s13
    // Predicated region
    $region53: #{ppo_forward.1} parent=5 // pred_check
      %p1403 = pneg %p1402
    $region54: #{ppo_forward.1} parent=5 // pred_check_branch
      %1405 = sbr.rel (%p1403) target = $region56
    $region55: #{ppo_forward.1} parent=5 // pred_region
      %s1406 = ssub.s32 %s13, 2
      // Predicated region
      $region57: #{ppo_forward.1} parent=55 // pred_check
        %p1407 = pneg %p194
      $region58: #{ppo_forward.1} parent=55 // pred_check_branch
        %1409 = sbr.rel (%p1407) target = $region60
      $region59: #{ppo_forward.1} parent=55 // pred_region
        %s1410 = smul.u32 16, %s19
        %p1411 = scmp.lt.s32.totalorder %s1410, 63
        %s1412 = scalar_select %p1411, %s1410, 63
        %s1413 = smul.addr %s1412, 8
        %s1414 = scalar_lea.vmem %s7, %s1413
      $region60: #{ppo_forward.1} parent=55 // pred_fallthru
        _
    $region56: #{ppo_forward.1} parent=5 // pred_fallthru
      _
  $region6: #{ppo_forward.1} parent=0 // loop_footer
    %s17 = sadd.s32 1, %s13
  $region7: #{ppo_forward.1} parent=0 // loop_footer_branch
    %12 = sbr.rel target = $region3
  $region8: #{ppo_forward.1} parent=0 // loop_exit
    _

</llo_original>
